<compile_context>
chip_gen: v5e
topology: v5e:2x2
jax: 0.10.0
libtpu: 0.0.40
codegen_flags: <defaults>
</compile_context>

<pallas_src>
import jax
import jax.numpy as jnp
from jax.experimental import pallas as pl
from jax.experimental.pallas import tpu as pltpu


def _patcher_kernel(x_ref, o_ref):
    # x_ref: (1, R, ph, npw, pw*C)   R patch-rows of the NHWC image (channels innermost)
    # o_ref: (1, R, npw, ph*pw*C)    lane-dense output slab, one row per patch
    ph = x_ref.shape[2]
    # Short static loop (ph is small, typically 4..16): gather the ph within-patch rows,
    # interleave them along the lane axis in-register, and emit a single dense D-wide
    # store for the whole block.  out[r, jp, i*pwC + k] = x[r, i, jp, k].
    parts = [x_ref[0, :, i, :, :] for i in range(ph)]
    o_ref[0, :, :, :] = jnp.concatenate(parts, axis=-1)


def _round_up(n, m):
    return ((n + m - 1) // m) * m


def _sublane_multiple(dtype):
    # Mosaic pads the second-minor dim to 8 (4-byte), 16 (2-byte) or 32 (1-byte) rows.
    itemsize = jnp.dtype(dtype).itemsize
    return max(8, 32 // max(itemsize, 1))


def _vmem_capacity_bytes():
    try:
        info = pltpu.get_tpu_info()
        cap = getattr(info, "vmem_capacity_bytes", None)
        if cap:
            return int(cap)
    except Exception:
        pass
    return 64 * 1024 * 1024   # conservative fallback (v7x per-TensorCore VMEM)


def _pick_rows(nph, batch, working_bytes_fn, step_hbm_bytes_fn, budget_bytes):
    """Pick R (divisor of nph): the largest R whose padded, double-buffered working set
    fits the VMEM budget.  Only trade down to more grid steps (>=4 total, so both v7x
    TensorCores get balanced work) when each step still moves >= 4 MiB of HBM traffic;
    on single-core v5e/v6e the largest tile is always kept."""
    divisors = [r for r in range(1, nph + 1) if nph % r == 0]
    fit = [r for r in divisors if working_bytes_fn(r) <= budget_bytes]
    if not fit:
        # Even a single patch-row slab exceeds the budget (enormous W*C); fall back to
        # R=1 and rely on the raised vmem_limit_bytes.  The compiler reports clearly if
        # this still does not fit physical VMEM.
        return 1
    best = max(fit)
    if batch * (nph // best) < 4:
        cand = [r for r in fit
                if batch * (nph // r) >= 4 and step_hbm_bytes_fn(r) >= (4 << 20)]
        if cand:
            best = max(cand)
    return best


def patcher(images, patch_size):
    """JAX/Pallas equivalent of Patcher(patch_size)(images)."""
    if images.ndim == 3:
        images = images[None]                 # match PyTorch unsqueeze(0)
    B, C, H, W = images.shape
    ph, pw = patch_size
    nph, npw = H // ph, W // pw
    num_patches = nph * npw
    pwC = pw * C
    D = ph * pwC

    # PyTorch unfold silently drops any remainder rows/cols; mirror that.
    images = images[:, :, : nph * ph, : npw * pw]

    # glue (XLA, fusible into the pallas_call via allow_input_fusion): one NCHW -> NHWC
    # transpose so C is innermost, then a free reshape exposing
    # (patch-row, within-patch-row, patch-col, within-col*channel).
    x_nhwc = jnp.transpose(images, (0, 2, 3, 1))            # (B, H', W', C)
    x5 = x_nhwc.reshape(B, nph, ph, npw, pwC)               # free reshape

    itemsize = jnp.dtype(images.dtype).itemsize
    sub = _sublane_multiple(images.dtype)
    npw_pad = _round_up(npw, sub)
    pwC_pad = _round_up(pwC, 128)
    d_pad = _round_up(D, 128)

    # Padded per-patch-row VMEM footprints (what Mosaic actually allocates).
    def in_pad_bytes(r):
        return r * ph * npw_pad * pwC_pad * itemsize

    def out_pad_bytes(r):
        return r * npw_pad * d_pad * itemsize

    def working_bytes(r):
        # 2x double-buffered input + 2x double-buffered output + headroom for the
        # in-register/spilled concatenate intermediate (~ one output block).
        return 2 * in_pad_bytes(r) + 3 * out_pad_bytes(r)

    def step_hbm_bytes(r):
        return 2 * r * ph * npw * pwC * itemsize             # read + write, unpadded

    vmem_cap = _vmem_capacity_bytes()
    budget = min(vmem_cap // 3, 48 << 20)
    R = _pick_rows(nph, B, working_bytes, step_hbm_bytes, budget)
    vmem_limit = int(min(vmem_cap, max(working_bytes(R) + (8 << 20), 32 << 20)))

    out4 = pl.pallas_call(
        _patcher_kernel,
        out_shape=jax.ShapeDtypeStruct((B, nph, npw, D), images.dtype),
        grid_spec=pltpu.PrefetchScalarGridSpec(
            num_scalar_prefetch=0,
            grid=(B, nph // R),
            in_specs=[
                # Last two block dims equal the full array dims -> no (8,128) constraint,
                # and the HBM read per step is one fully contiguous slab.
                pl.BlockSpec((1, R, ph, npw, pwC), lambda b, r: (b, r, 0, 0, 0)),
            ],
            # Lane-dense output slab; HBM write per step is fully contiguous.  If D is
            # not a multiple of 128 only the per-row tail store is masked.
            out_specs=pl.BlockSpec((1, R, npw, D), lambda b, r: (b, r, 0, 0)),
        ),
        compiler_params=pltpu.CompilerParams(
            dimension_semantics=("parallel", "parallel"),
            vmem_limit_bytes=vmem_limit,
            allow_input_fusion=[True]),
        cost_estimate=pl.CostEstimate(
            flops=0,
            transcendentals=0,
            bytes_accessed=2 * B * nph * ph * npw * pwC * itemsize),
    )(x5)

    # glue: pure reshape -- memory order is already (b, patch, i, j, c).
    return out4.reshape(B, num_patches, D)


def _reference(images, patch_size):
    # pure-JAX reference reproducing the PyTorch unfold/permute/view semantics
    if images.ndim == 3:
        images = images[None]
    B, C, H, W = images.shape
    ph, pw = patch_size
    nph, npw = H // ph, W // pw
    x = images[:, :, : nph * ph, : npw * pw]
    x = x.reshape(B, C, nph, ph, npw, pw)
    x = jnp.transpose(x, (0, 2, 4, 3, 5, 1))
    return x.reshape(B, nph * npw, ph * pw * C)


if __name__ == "__main__":
    key = jax.random.PRNGKey(0)
    k4, k3 = jax.random.split(key)

    B, C, H, W = 2, 4, 16, 16
    patch_size = (4, 4)
    images = jax.random.normal(k4, (B, C, H, W), dtype=jnp.float32)

    out = jax.block_until_ready(patcher(images, patch_size))
    ref = _reference(images, patch_size)
    assert out.shape == ref.shape, (out.shape, ref.shape)
    assert out.dtype == images.dtype
    assert jnp.allclose(out, ref), "kernel output mismatch vs reference (4-D input)"

    # 3-D input path (PyTorch unsqueeze(0))
    img3 = jax.random.normal(k3, (C, H, W), dtype=jnp.float32)
    out3 = jax.block_until_ready(patcher(img3, patch_size))
    assert jnp.allclose(out3, _reference(img3, patch_size)), \
        "kernel output mismatch vs reference (3-D input)"

    print("KERNEL_OK")
</pallas_src>

<mosaic_0001>
module attributes {stable_mosaic.version = 11 : i64} {
  func.func @_patcher_kernel(%arg0: i32, %arg1: i32, %arg2: memref<1x4x4x4x16xf32, #tpu.memory_space<vmem>>, %arg3: memref<1x4x4x64xf32, #tpu.memory_space<vmem>>) attributes {dimension_semantics = [#tpu.dimension_semantics<parallel>, #tpu.dimension_semantics<parallel>], iteration_bounds = array<i64: 2, 1>, scalar_prefetch = 0 : i64, scratch_operands = 0 : i64, tpu.core_type = #tpu.core_type<tc>, window_params = [{transform_indices = @transform_0, window_bounds = array<i64: 1, 4, 4, 4, 16>}, {transform_indices = @transform_1, window_bounds = array<i64: 1, 4, 4, 64>}]} {
    %c0 = arith.constant 0 : index
    %c0_0 = arith.constant 0 : index
    %c0_1 = arith.constant 0 : index
    %c0_2 = arith.constant 0 : index
    %c0_3 = arith.constant 0 : index
    %0 = vector.load %arg2[%c0, %c0_0, %c0_1, %c0_2, %c0_3] : memref<1x4x4x4x16xf32, #tpu.memory_space<vmem>>, vector<1x4x1x4x16xf32>
    %1 = vector.shape_cast %0 : vector<1x4x1x4x16xf32> to vector<4x4x16xf32>
    %c0_4 = arith.constant 0 : index
    %c0_5 = arith.constant 0 : index
    %c1 = arith.constant 1 : index
    %c0_6 = arith.constant 0 : index
    %c0_7 = arith.constant 0 : index
    %2 = vector.load %arg2[%c0_4, %c0_5, %c1, %c0_6, %c0_7] : memref<1x4x4x4x16xf32, #tpu.memory_space<vmem>>, vector<1x4x1x4x16xf32>
    %3 = vector.shape_cast %2 : vector<1x4x1x4x16xf32> to vector<4x4x16xf32>
    %c0_8 = arith.constant 0 : index
    %c0_9 = arith.constant 0 : index
    %c2 = arith.constant 2 : index
    %c0_10 = arith.constant 0 : index
    %c0_11 = arith.constant 0 : index
    %4 = vector.load %arg2[%c0_8, %c0_9, %c2, %c0_10, %c0_11] : memref<1x4x4x4x16xf32, #tpu.memory_space<vmem>>, vector<1x4x1x4x16xf32>
    %5 = vector.shape_cast %4 : vector<1x4x1x4x16xf32> to vector<4x4x16xf32>
    %c0_12 = arith.constant 0 : index
    %c0_13 = arith.constant 0 : index
    %c3 = arith.constant 3 : index
    %c0_14 = arith.constant 0 : index
    %c0_15 = arith.constant 0 : index
    %6 = vector.load %arg2[%c0_12, %c0_13, %c3, %c0_14, %c0_15] : memref<1x4x4x4x16xf32, #tpu.memory_space<vmem>>, vector<1x4x1x4x16xf32>
    %7 = vector.shape_cast %6 : vector<1x4x1x4x16xf32> to vector<4x4x16xf32>
    %8 = tpu.concatenate %1, %3, %5, %7 in 2 : vector<4x4x16xf32>, vector<4x4x16xf32>, vector<4x4x16xf32>, vector<4x4x16xf32> -> vector<4x4x64xf32>
    %c0_16 = arith.constant 0 : index
    %c0_17 = arith.constant 0 : index
    %c0_18 = arith.constant 0 : index
    %c0_19 = arith.constant 0 : index
    %9 = vector.load %arg3[%c0_16, %c0_17, %c0_18, %c0_19] : memref<1x4x4x64xf32, #tpu.memory_space<vmem>>, vector<1x4x4x64xf32>
    %10 = vector.shape_cast %9 : vector<1x4x4x64xf32> to vector<4x4x64xf32>
    %11 = vector.shape_cast %8 : vector<4x4x64xf32> to vector<1x4x4x64xf32>
    tpu.vector_store %arg3[%c0_16, %c0_17, %c0_18, %c0_19], %11 {strides = array<i32>} : memref<1x4x4x64xf32, #tpu.memory_space<vmem>>, vector<1x4x4x64xf32>,
    return
  }
  func.func @transform_0(%arg0: i32, %arg1: i32) -> (i32, i32, i32, i32, i32) {
    %c0_i32 = arith.constant 0 : i32
    %c0_i32_0 = arith.constant 0 : i32
    %c0_i32_1 = arith.constant 0 : i32
    %c0_i32_2 = arith.constant 0 : i32
    return %arg0, %arg1, %c0_i32, %c0_i32_0, %c0_i32_1 : i32, i32, i32, i32, i32
  }
  func.func @transform_1(%arg0: i32, %arg1: i32) -> (i32, i32, i32, i32) {
    %c0_i32 = arith.constant 0 : i32
    %c0_i32_0 = arith.constant 0 : i32
    %c0_i32_1 = arith.constant 0 : i32
    return %arg0, %arg1, %c0_i32, %c0_i32_0 : i32, i32, i32, i32
  }
}

</mosaic_0001>

<llo_original>
// kernel: tpu_custom_call.1
$region0: #{tpu_custom_call.1}
  #allocation0 [shape = 'u32[]', space=smem, size = 0x4, offset = 0x4, fixed_abs, tag = 'smem constant byte address 0x4 - core index']
  #allocation1 [shape = 'u32[72,128]{1,0:T(1,128)}', space=vmem, size = 0x9000, scoped, tag = 'internal scratch']
  %s0 = inlined_call_operand.hbm [shape: f32[2,4,4,4,16], index: 0, kind: input, shape index: {}]
  %s1 = inlined_call_operand.hbm [shape: f32[2,4,4,64], index: 1, kind: output, shape index: {}]
  %s2 = sld [smem:[#allocation0]]
  $region41: #{tpu_custom_call.1} parent=0
    _
  %s4 = ssub.s32 1, %s2
  %s5 = scalar_select 0, %s4, %s2
  $region1: #{tpu_custom_call.1} parent=0
    #allocation2 [shape = 'u8[65536]{0}', space=vmem, size = 0x10000, scoped, tag = 'input window, operand 0']
    #allocation3 [shape = 's32[2]{0}', space=sflag, size = 0x8, scoped, tag = 'scoped memory for tpu_custom_call.1']
    #allocation4 [shape = 's32[2]{0}', space=sflag, size = 0x8, scoped, tag = 'scoped memory for tpu_custom_call.1']
    #allocation5 [shape = 'u8[16384]{0}', space=vmem, size = 0x4000, scoped, tag = 'output window, operand 0']
    %6 = vsyncpa [#allocation3], 0
    %s7 = scalar_lea.sflag [#allocation3], 1
    %8 = vsyncpa %s7, 0
    %9 = vsyncpa [#allocation4], 0
    %s10 = scalar_lea.sflag [#allocation4], 1
    %11 = vsyncpa %s10, 0
    loop: start=0, step=1, limit=4
    $region2: #{tpu_custom_call.1} parent=1 // loop_pre_header
      _
    $region3: #{tpu_custom_call.1} parent=1 // loop_header
      %s13 = sphi 0, %s17
      %p14 = scmp.ge.s32.totalorder %s13, 4
      %s20 = sphi 0, %s32
      %s21 = sphi 0, %s28
      %s22 = sphi 0, %s20
      %s23 = sphi 0, %s21
      %s24 = sphi 0, %s22
      %s25 = sphi 0, %s23
      %s37 = sphi 0, %s39
      %s40 = sphi 0, %s37
      %s41 = sphi 0, %s40
      %s57 = sphi 0, %s41
      %s65 = sphi 0, %s67
      %s68 = sphi 0, %s65
      %s69 = sphi 0, %s68
      %s85 = sphi 0, %s69
    $region4: #{tpu_custom_call.1} parent=1 // loop_header_branch
      %16 = sbr.rel (%p14) target = $region8
    $region5: #{tpu_custom_call.1} parent=1 // loop_body
      %s18 = ssub.s32 %s13, 1
      %s19 = ssub.s32 %s13, 2
      %s26 = sadd.s32 1, %s21
      %p27 = scmp.ge.s32.totalorder %s26, 1
      %s28 = scalar_select %p27, 0, %s26
      %s29 = sadd.s32 1, %s20
      %s30 = scalar_select %p27, %s29, %s20
      %p31 = scmp.ge.s32.totalorder %s30, 2
      %s32 = scalar_select %p31, 0, %s30
      %s33 = ssub.s32 %s20, %s32
      %s34 = ssub.s32 %s21, %s28
      %s35 = sor.u32 %s33, %s34
      %p36 = scmp.eq.s32.totalorder %s35, 0
      %s38 = sadd.s32 %s37, 1
      %s39 = scalar_select %p36, %s37, %s38
      %p42 = pneg %p36
      %p43 = scmp.eq.s32.totalorder %s13, 1
      %p44 = por %p42, %p43
      %p45 = scmp.ne.s32.totalorder %s37, %s40
      %p46 = scmp.eq.s32.totalorder %s13, 0
      %p47 = por %p45, %p46
      %p48 = scmp.ne.s32.totalorder %s37, %s40
      %p49 = scmp.eq.s32.totalorder %s18, 1
      %p50 = por %p48, %p49
      %p51 = scmp.ne.s32.totalorder %s40, %s41
      %p52 = scmp.eq.s32.totalorder %s18, 0
      %p53 = por %p51, %p52
      %p54 = scmp.ne.s32.totalorder %s40, %s41
      %p55 = scmp.eq.s32.totalorder %s19, 1
      %p56 = por %p54, %p55
      %p58 = scmp.ne.s32.totalorder %s41, %s57
      %p59 = scmp.eq.s32.totalorder %s19, 0
      %p60 = por %p58, %p59
      %s61 = ssub.s32 %s20, %s32
      %s62 = ssub.s32 %s21, %s28
      %s63 = sor.u32 %s61, %s62
      %p64 = scmp.eq.s32.totalorder %s63, 0
      %s66 = sadd.s32 %s65, 1
      %s67 = scalar_select %p64, %s65, %s66
      %p70 = pneg %p64
      %p71 = scmp.eq.s32.totalorder %s13, 1
      %p72 = por %p70, %p71
      %p73 = scmp.ne.s32.totalorder %s65, %s68
      %p74 = scmp.eq.s32.totalorder %s13, 0
      %p75 = por %p73, %p74
      %p76 = scmp.ne.s32.totalorder %s65, %s68
      %p77 = scmp.eq.s32.totalorder %s18, 1
      %p78 = por %p76, %p77
      %p79 = scmp.ne.s32.totalorder %s68, %s69
      %p80 = scmp.eq.s32.totalorder %s18, 0
      %p81 = por %p79, %p80
      %p82 = scmp.ne.s32.totalorder %s68, %s69
      %p83 = scmp.eq.s32.totalorder %s19, 1
      %p84 = por %p82, %p83
      %p86 = scmp.ne.s32.totalorder %s69, %s85
      %p87 = scmp.eq.s32.totalorder %s19, 0
      %p88 = por %p86, %p87
      %p89 = scmp.le.s32.totalorder 1, %s13
      %p90 = scmp.lt.s32.totalorder %s13, 3
      %p91 = pnand %p89, %p90
      %p92 = pneg %p91
      // Predicated region
      $region9: #{tpu_custom_call.1} parent=5 // pred_check
        _
      $region10: #{tpu_custom_call.1} parent=5 // pred_check_branch
        %94 = sbr.rel (%p91) target = $region12
      $region11: #{tpu_custom_call.1} parent=5 // pred_region
        %s95 = ssub.s32 %s13, 1
      $region12: #{tpu_custom_call.1} parent=5 // pred_fallthru
        _
      %p96 = scmp.lt.s32.totalorder %s13, 2
      // Predicated region
      $region13: #{tpu_custom_call.1} parent=5 // pred_check
        %p97 = pneg %p96
      $region14: #{tpu_custom_call.1} parent=5 // pred_check_branch
        %99 = sbr.rel (%p97) target = $region16
      $region15: #{tpu_custom_call.1} parent=5 // pred_region
        // Predicated region
        $region17: #{tpu_custom_call.1} parent=15 // pred_check
          %p100 = pneg %p47
        $region18: #{tpu_custom_call.1} parent=15 // pred_check_branch
          %102 = sbr.rel (%p100) target = $region20
        $region19: #{tpu_custom_call.1} parent=15 // pred_region
          %s103 = sand.u32 %s37, 1
          %s104 = scalar_lea.sflag [#allocation3], %s103
          %s105 = sand.u32 %s37, 1
          %s106 = smul.addr %s105, 64
          %s107 = scalar_lea.vmem [#allocation2], %s106
          %s108 = smul.u32 4, %s21
          %110 = vsyncadd %s104, 0
          %s111 = smul.addr %s108, 4
          %s112 = smul.addr %s20, 16
          %s113 = sadd.s32 %s111, %s112
          %s114 = smul.addr %s113, 4
          %s115 = scalar_lea.hbm %s0, %s114
          %s116 = sshll.u32 %s115, 4
          %s117 = int_to_ptr.hbm [resolvable:$true] %s116
          %s118 = sshll.u32 %s107, 4
          %s119 = int_to_ptr.vmem [resolvable:$true] %s118
          %124 = dma.hbm_to_vmem [thread:$0]  %s117, 1024, %s119, %s104, 64, 64, 4
        $region20: #{tpu_custom_call.1} parent=15 // pred_fallthru
          _
      $region16: #{tpu_custom_call.1} parent=5 // pred_fallthru
        _
      %p125 = scmp.le.s32.totalorder 1, %s13
      %p126 = scmp.lt.s32.totalorder %s13, 3
      %p127 = pnand %p125, %p126
      %p128 = pneg %p127
      // Predicated region
      $region21: #{tpu_custom_call.1} parent=5 // pred_check
        _
      $region22: #{tpu_custom_call.1} parent=5 // pred_check_branch
        %130 = sbr.rel (%p127) target = $region24
      $region23: #{tpu_custom_call.1} parent=5 // pred_region
        %s131 = ssub.s32 %s13, 1
        %s132 = sand.u32 %s40, 1
        %s133 = scalar_lea.sflag [#allocation3], %s132
        %s134 = sand.u32 %s40, 1
        %s135 = smul.addr %s134, 64
        %s136 = scalar_lea.vmem [#allocation2], %s135
        // Predicated region
        $region25: #{tpu_custom_call.1} parent=23 // pred_check
          %p137 = pneg %p53
        $region26: #{tpu_custom_call.1} parent=23 // pred_check_branch
          %139 = sbr.rel (%p137) target = $region28
        $region27: #{tpu_custom_call.1} parent=23 // pred_region
          %141 = dma.done %s133, 1024
        $region28: #{tpu_custom_call.1} parent=23 // pred_fallthru
          _
        %s142 = sand.u32 %s40, 1
        %s143 = scalar_lea.sflag [#allocation3], %s142
        %s144 = sand.u32 %s40, 1
        %s145 = smul.addr %s144, 64
        %s146 = scalar_lea.vmem [#allocation2], %s145
        %p147 = pneg %p53
        %p148 = pneg %p50
        %p149 = pneg %p81
        %p150 = pneg %p78
        %s151 = sand.u32 %s68, 1
        %s152 = scalar_lea.sflag [#allocation4], %s151
        %s153 = sand.u32 %s68, 1
        %s154 = smul.addr %s153, 16
        %s155 = scalar_lea.vmem [#allocation5], %s154
        %s156 = smul.u32 4, %s23
        %s157 = smul.u32 4, %s23
        %v158 = vld [vmem:[%s136] sm:$0xf]
        %v159 = vld [vmem:[%s136 + $0x10] sm:$0xf]
        %v160 = vld [vmem:[%s136 + $0x20] sm:$0xf]
        %v161 = vld [vmem:[%s136 + $0x30] sm:$0xf]
        %s162 = scalar_lea.vmem %s136, 4 [#allocation2]
        %v163 = vld [vmem:[%s162] sm:$0xf]
        %v164 = vld [vmem:[%s162 + $0x10] sm:$0xf]
        %v165 = vld [vmem:[%s162 + $0x20] sm:$0xf]
        %v166 = vld [vmem:[%s162 + $0x30] sm:$0xf]
        %s167 = scalar_lea.vmem %s136, 8 [#allocation2]
        %v168 = vld [vmem:[%s167] sm:$0xf]
        %v169 = vld [vmem:[%s167 + $0x10] sm:$0xf]
        %v170 = vld [vmem:[%s167 + $0x20] sm:$0xf]
        %v171 = vld [vmem:[%s167 + $0x30] sm:$0xf]
        %s172 = scalar_lea.vmem %s136, 12 [#allocation2]
        %v173 = vld [vmem:[%s172] sm:$0xf]
        %v174 = vld [vmem:[%s172 + $0x10] sm:$0xf]
        %v175 = vld [vmem:[%s172 + $0x20] sm:$0xf]
        %v176 = vld [vmem:[%s172 + $0x30] sm:$0xf]
        %181 = vrot.lane.b32.xlu0 %v163, 16
        %v182 = vpop.permute.xlu0 %181
        %183 = vrot.lane.b32.xlu0 %v164, 16
        %v184 = vpop.permute.xlu0 %183
        %185 = vrot.lane.b32.xlu0 %v165, 16
        %v186 = vpop.permute.xlu0 %185
        %187 = vrot.lane.b32.xlu0 %v166, 16
        %v188 = vpop.permute.xlu0 %187
        %197 = vrot.lane.b32.xlu0 %v168, 32
        %v198 = vpop.permute.xlu0 %197
        %199 = vrot.lane.b32.xlu0 %v169, 32
        %v200 = vpop.permute.xlu0 %199
        %201 = vrot.lane.b32.xlu0 %v170, 32
        %v202 = vpop.permute.xlu0 %201
        %203 = vrot.lane.b32.xlu0 %v171, 32
        %v204 = vpop.permute.xlu0 %203
        %213 = vrot.lane.b32.xlu0 %v173, 48
        %v214 = vpop.permute.xlu0 %213
        %215 = vrot.lane.b32.xlu0 %v174, 48
        %v216 = vpop.permute.xlu0 %215
        %217 = vrot.lane.b32.xlu0 %v175, 48
        %v218 = vpop.permute.xlu0 %217
        %219 = vrot.lane.b32.xlu0 %v176, 48
        %v220 = vpop.permute.xlu0 %219
        %vm225 = vcmask 130048
        %v226 = vsel %vm225, %v158, %v182
        %v227 = vsel %vm225, %v159, %v184
        %v228 = vsel %vm225, %v160, %v186
        %v229 = vsel %vm225, %v161, %v188
        %vm230 = vcmask 261120
        %v231 = vsel %vm230, %v226, %v198
        %v232 = vsel %vm230, %v227, %v200
        %v233 = vsel %vm230, %v228, %v202
        %v234 = vsel %vm230, %v229, %v204
        %vm235 = vcmask 392192
        %v236 = vsel %vm235, %v231, %v214
        %v237 = vsel %vm235, %v232, %v216
        %v238 = vsel %vm235, %v233, %v218
        %v239 = vsel %vm235, %v234, %v220
        %vm240 = vcmask 519168
        %241 = vst.msk [vmem:[%s155] sm:$0xf] %vm240, %v236
        %242 = vst.msk [vmem:[%s155 + $0x4] sm:$0xf] %vm240, %v237
        %243 = vst.msk [vmem:[%s155 + $0x8] sm:$0xf] %vm240, %v238
        %244 = vst.msk [vmem:[%s155 + $0xc] sm:$0xf] %vm240, %v239
        %s245 = sand.u32 %s68, 1
        %s246 = scalar_lea.sflag [#allocation4], %s245
        %s247 = sand.u32 %s68, 1
        %s248 = smul.addr %s247, 16
        %s249 = scalar_lea.vmem [#allocation5], %s248
        // Predicated region
        $region29: #{tpu_custom_call.1} parent=23 // pred_check
          %p250 = pneg %p78
        $region30: #{tpu_custom_call.1} parent=23 // pred_check_branch
          %252 = sbr.rel (%p250) target = $region32
        $region31: #{tpu_custom_call.1} parent=23 // pred_region
          %s253 = smul.u32 4, %s23
          %255 = vsyncadd %s246, 0
          %s256 = smul.addr %s22, 4
          %s257 = sadd.s32 %s253, %s256
          %s258 = smul.addr %s257, 4
          %s259 = scalar_lea.hbm %s1, %s258
          %s260 = sshll.u32 %s249, 4
          %s261 = int_to_ptr.vmem [resolvable:$true] %s260
          %s262 = sshll.u32 %s259, 4
          %s263 = int_to_ptr.hbm [resolvable:$true] %s262
          %268 = dma.vmem_to_hbm [thread:$0]  %s261, 256, %s263, %s246, 64, 64, 4
        $region32: #{tpu_custom_call.1} parent=23 // pred_fallthru
          _
      $region24: #{tpu_custom_call.1} parent=5 // pred_fallthru
        _
      %p269 = scmp.le.s32.totalorder 2, %s13
      // Predicated region
      $region33: #{tpu_custom_call.1} parent=5 // pred_check
        %p270 = pneg %p269
      $region34: #{tpu_custom_call.1} parent=5 // pred_check_branch
        %272 = sbr.rel (%p270) target = $region36
      $region35: #{tpu_custom_call.1} parent=5 // pred_region
        %s273 = ssub.s32 %s13, 2
        // Predicated region
        $region37: #{tpu_custom_call.1} parent=35 // pred_check
          %p274 = pneg %p84
        $region38: #{tpu_custom_call.1} parent=35 // pred_check_branch
          %276 = sbr.rel (%p274) target = $region40
        $region39: #{tpu_custom_call.1} parent=35 // pred_region
          %s277 = sand.u32 %s69, 1
          %s278 = scalar_lea.sflag [#allocation4], %s277
          %s279 = sand.u32 %s69, 1
          %s280 = smul.addr %s279, 16
          %s281 = scalar_lea.vmem [#allocation5], %s280
          %283 = dma.done %s278, 256
        $region40: #{tpu_custom_call.1} parent=35 // pred_fallthru
          _
      $region36: #{tpu_custom_call.1} parent=5 // pred_fallthru
        _
    $region6: #{tpu_custom_call.1} parent=1 // loop_footer
      %s17 = sadd.s32 1, %s13
    $region7: #{tpu_custom_call.1} parent=1 // loop_footer_branch
      %12 = sbr.rel target = $region3
    $region8: #{tpu_custom_call.1} parent=1 // loop_exit
      _
    %284 = vsyncpa [#allocation3], 1
    %s285 = scalar_lea.sflag [#allocation3], 1
    %286 = vsyncpa %s285, 1
    %287 = vsyncpa [#allocation4], 1
    %s288 = scalar_lea.sflag [#allocation4], 1
    %289 = vsyncpa %s288, 1

</llo_original>
